<compile_context>
chip_gen: v7x
topology: tpu7x:2x2x1
jax: 0.10.0
libtpu: 0.0.40
codegen_flags: <defaults>
</compile_context>

<pallas_src>
import jax
import jax.numpy as jnp
from jax import lax
from jax.experimental import pallas as pl
from jax.experimental.pallas import tpu as pltpu

_T = 0.07           # MoCo temperature (module references self.T but never sets it)
_EPS = 1e-12        # torch.nn.functional.normalize eps


def _prep_kernel(q_ref, k_ref, qn_ref, l_pos_ref):
    """Normalize q & k in f32, fold 1/T into q, emit positive logits (N, 1)."""
    q = q_ref[...].astype(jnp.float32)          # (N, C)
    k = k_ref[...].astype(jnp.float32)          # (N, C)

    # F.normalize(x, dim=1): x / max(||x||, eps) == x * rsqrt(max(||x||^2, eps^2))
    q_inv = lax.rsqrt(jnp.maximum(jnp.sum(q * q, axis=1, keepdims=True), _EPS * _EPS))
    k_inv = lax.rsqrt(jnp.maximum(jnp.sum(k * k, axis=1, keepdims=True), _EPS * _EPS))

    inv_t = jnp.float32(1.0 / _T)
    qn_scaled = q * q_inv * inv_t               # fold 1/T here: N*C muls, not N*(1+K)
    kn = k * k_inv

    # l_pos = einsum('nc,nc->n', q, k)[:, None] / T
    l_pos_ref[...] = jnp.sum(qn_scaled * kn, axis=1, keepdims=True)
    # Only the MXU feed is cast to the (possibly bf16) matmul dtype.
    qn_ref[...] = qn_scaled.astype(qn_ref.dtype)


def _neg_kernel(qn_ref, queue_ref, l_neg_ref):
    """One K-tile of l_neg = (q/T) @ queue — a single MXU matmul, f32 accumulate."""
    l_neg_ref[...] = jnp.dot(
        qn_ref[...], queue_ref[...], preferred_element_type=jnp.float32
    ).astype(l_neg_ref.dtype)


def _pick_tk(K, dtype):
    """K tile: multiple of 128, sized so double-buffered (C, TK) queue tiles stay
    well under VMEM on every generation (v7x has only 64 MiB physical VMEM)."""
    cap = 8192 if jnp.dtype(dtype).itemsize <= 2 else 4096
    return K if K <= cap else cap


def replay_forward(im_q, im_k, queue_ck, *, tk=None, matmul_dtype=jnp.bfloat16):
    """im_q, im_k: (N, C) features; queue_ck: (C, K). Returns (logits, labels)."""
    N, C = im_q.shape
    K = queue_ck.shape[1]
    if tk is None:
        tk = _pick_tk(K, matmul_dtype)

    # ---- prep: normalization + positive logits (tiny, single block) --------
    qn_scaled, l_pos = pl.pallas_call(
        _prep_kernel,
        out_shape=(
            jax.ShapeDtypeStruct((N, C), matmul_dtype),
            jax.ShapeDtypeStruct((N, 1), jnp.float32),
        ),
        in_specs=[
            pl.BlockSpec((N, C), lambda: (0, 0)),
            pl.BlockSpec((N, C), lambda: (0, 0)),
        ],
        out_specs=(
            pl.BlockSpec((N, C), lambda: (0, 0)),
            pl.BlockSpec((N, 1), lambda: (0, 0)),
        ),
    )(im_q, im_k)

    # ---- negative logits: stream the queue over K, double-buffered ---------
    queue_stream = queue_ck.astype(matmul_dtype)   # bf16 queue halves HBM traffic
    grid_k = pl.cdiv(K, tk)
    l_neg = pl.pallas_call(
        _neg_kernel,
        out_shape=jax.ShapeDtypeStruct((N, K), jnp.float32),
        grid_spec=pltpu.PrefetchScalarGridSpec(
            num_scalar_prefetch=0,
            grid=(grid_k,),
            in_specs=[
                pl.BlockSpec((N, C), lambda k: (0, 0)),     # resident across K
                pl.BlockSpec((C, tk), lambda k: (0, k)),    # streamed queue tile
            ],
            out_specs=pl.BlockSpec((N, tk), lambda k: (0, k)),  # lane-dense store
        ),
        compiler_params=pltpu.CompilerParams(
            dimension_semantics=("parallel",),              # shards K across TCs on v7x
            vmem_limit_bytes=32 * 1024 * 1024,
        ),
    )(qn_scaled, queue_stream)

    # logits = cat([l_pos, l_neg], 1) / T  (1/T already folded into qn_scaled)
    logits = jnp.concatenate([l_pos, l_neg], axis=1)
    # TODO(synk): torch uses int64 labels; int32 kept (JAX x64 is off by default).
    labels = jnp.zeros((N,), dtype=jnp.int32)
    return logits, labels


def _reference(im_q, im_k, queue_ck, matmul_dtype):
    q = im_q.astype(jnp.float32)
    k = im_k.astype(jnp.float32)
    q_inv = lax.rsqrt(jnp.maximum(jnp.sum(q * q, 1, keepdims=True), _EPS * _EPS))
    k_inv = lax.rsqrt(jnp.maximum(jnp.sum(k * k, 1, keepdims=True), _EPS * _EPS))
    inv_t = jnp.float32(1.0 / _T)
    qn_scaled = q * q_inv * inv_t
    kn = k * k_inv
    l_pos = jnp.sum(qn_scaled * kn, 1, keepdims=True)
    l_neg = jnp.dot(
        qn_scaled.astype(matmul_dtype),
        queue_ck.astype(matmul_dtype),
        preferred_element_type=jnp.float32,
    )
    return jnp.concatenate([l_pos, l_neg], axis=1)


if __name__ == "__main__":
    key = jax.random.PRNGKey(0)
    N, C, BUFFER_SIZE = 8, 32, 512          # input_size = (C,), buffer_size = K

    k1, k2, k3 = jax.random.split(key, 3)
    im_q = jax.random.normal(k1, (N, C), dtype=jnp.float32)
    im_k = jax.random.normal(k2, (N, C), dtype=jnp.float32)

    # __init__ registers queue_data = zeros((buffer_size,) + input_size); use a
    # deterministic random fill so the negative logits are nontrivial.
    queue_data = jax.random.normal(k3, (BUFFER_SIZE, C), dtype=jnp.float32)
    queue_ck = queue_data.T                 # (C, K), the MoCo queue layout

    # Production path: bf16-streamed queue, tk=128 exercises a 4-step K grid.
    logits, labels = replay_forward(im_q, im_k, queue_ck, tk=128)
    jax.block_until_ready((logits, labels))
    assert logits.shape == (N, 1 + BUFFER_SIZE)
    assert labels.shape == (N,)
    ref_bf16 = _reference(im_q, im_k, queue_ck, jnp.bfloat16)
    assert jnp.allclose(logits, ref_bf16, atol=5e-2, rtol=1e-2)

    # f32 path (same kernels, no bf16 cast) checked as well.
    logits_f32, _ = replay_forward(
        im_q, im_k, queue_ck, tk=128, matmul_dtype=jnp.float32
    )
    jax.block_until_ready(logits_f32)
    ref_f32 = _reference(im_q, im_k, queue_ck, jnp.float32)
    assert jnp.allclose(logits_f32, ref_f32, atol=5e-2, rtol=1e-2)

    print("KERNEL_OK")
</pallas_src>

<mosaic_0001>
module attributes {stable_mosaic.version = 11 : i64} {
  func.func @_prep_kernel(%arg0: memref<8x32xf32, #tpu.memory_space<vmem>>, %arg1: memref<8x32xf32, #tpu.memory_space<vmem>>, %arg2: memref<8x32xbf16, #tpu.memory_space<vmem>>, %arg3: memref<8x1xf32, #tpu.memory_space<vmem>>) attributes {dimension_semantics = [], scalar_prefetch = 0 : i64, scratch_operands = 0 : i64, tpu.core_type = #tpu.core_type<tc>} {
    %c0 = arith.constant 0 : index
    %c0_0 = arith.constant 0 : index
    %0 = vector.load %arg0[%c0, %c0_0] : memref<8x32xf32, #tpu.memory_space<vmem>>, vector<8x32xf32>
    %c0_1 = arith.constant 0 : index
    %c0_2 = arith.constant 0 : index
    %1 = vector.load %arg1[%c0_1, %c0_2] : memref<8x32xf32, #tpu.memory_space<vmem>>, vector<8x32xf32>
    %2 = arith.mulf %0, %0 : vector<8x32xf32>
    %cst = arith.constant dense<0.000000e+00> : vector<8xf32>
    %3 = vector.multi_reduction <add>, %2, %cst [1] : vector<8x32xf32> to vector<8xf32>
    %4 = vector.shape_cast %3 : vector<8xf32> to vector<8x1xf32>
    %cst_3 = arith.constant 1.000000e-24 : f32
    %5 = vector.broadcast %cst_3 : f32 to vector<8x1xf32>
    %6 = arith.maximumf %4, %5 : vector<8x1xf32>
    %7 = math.rsqrt %6 : vector<8x1xf32>
    %8 = arith.mulf %1, %1 : vector<8x32xf32>
    %cst_4 = arith.constant dense<0.000000e+00> : vector<8xf32>
    %9 = vector.multi_reduction <add>, %8, %cst_4 [1] : vector<8x32xf32> to vector<8xf32>
    %10 = vector.shape_cast %9 : vector<8xf32> to vector<8x1xf32>
    %cst_5 = arith.constant 1.000000e-24 : f32
    %11 = vector.broadcast %cst_5 : f32 to vector<8x1xf32>
    %12 = arith.maximumf %10, %11 : vector<8x1xf32>
    %13 = math.rsqrt %12 : vector<8x1xf32>
    %14 = vector.broadcast %7 : vector<8x1xf32> to vector<8x32xf32>
    %15 = arith.mulf %0, %14 : vector<8x32xf32>
    %cst_6 = arith.constant 14.2857141 : f32
    %16 = vector.broadcast %cst_6 : f32 to vector<8x32xf32>
    %17 = arith.mulf %15, %16 : vector<8x32xf32>
    %18 = vector.broadcast %13 : vector<8x1xf32> to vector<8x32xf32>
    %19 = arith.mulf %1, %18 : vector<8x32xf32>
    %20 = arith.mulf %17, %19 : vector<8x32xf32>
    %cst_7 = arith.constant dense<0.000000e+00> : vector<8xf32>
    %21 = vector.multi_reduction <add>, %20, %cst_7 [1] : vector<8x32xf32> to vector<8xf32>
    %22 = vector.shape_cast %21 : vector<8xf32> to vector<8x1xf32>
    %c0_8 = arith.constant 0 : index
    %c0_9 = arith.constant 0 : index
    %23 = vector.load %arg3[%c0_8, %c0_9] : memref<8x1xf32, #tpu.memory_space<vmem>>, vector<8x1xf32>
    tpu.vector_store %arg3[%c0_8, %c0_9], %22 {strides = array<i32>} : memref<8x1xf32, #tpu.memory_space<vmem>>, vector<8x1xf32>,
    %24 = arith.truncf %17 : vector<8x32xf32> to vector<8x32xbf16>
    %c0_10 = arith.constant 0 : index
    %c0_11 = arith.constant 0 : index
    %25 = vector.load %arg2[%c0_10, %c0_11] : memref<8x32xbf16, #tpu.memory_space<vmem>>, vector<8x32xbf16>
    tpu.vector_store %arg2[%c0_10, %c0_11], %24 {strides = array<i32>} : memref<8x32xbf16, #tpu.memory_space<vmem>>, vector<8x32xbf16>,
    return
  }
}

</mosaic_0001>

<llo_original>
// kernel: tpu_custom_call.1
$region0: #{tpu_custom_call.1}
  #allocation0 [shape = 'u32[]', space=smem, size = 0x4, offset = 0x4, fixed_abs, tag = 'smem constant byte address 0x4 - core index']
  #allocation1 [shape = 'u32[144,128]{1,0:T(1,128)}', space=vmem, size = 0x12000, scoped, tag = 'internal scratch']
  %s0 = inlined_call_operand.hbm [shape: f32[8,32], index: 0, kind: input, shape index: {}]
  %s1 = inlined_call_operand.hbm [shape: f32[8,32], index: 1, kind: input, shape index: {}]
  %s2 = inlined_call_operand.hbm [shape: bf16[8,32], index: 2, kind: output, shape index: {0}]
  %s3 = inlined_call_operand.vmem [shape: f32[8,1], index: 3, kind: output, shape index: {1}]
  %4 = xla_tuple %s2, %s3
  %s5 = sld [smem:[#allocation0]]
  $region34: #{tpu_custom_call.1} parent=0
    _
  %s7 = ssub.s32 1, %s5
  %s8 = scalar_select 0, %s7, %s5
  $region1: #{tpu_custom_call.1} parent=0
    #allocation2 [shape = 'u8[4096]{0}', space=vmem, size = 0x1000, scoped, tag = 'input window, operand 0, single buffered']
    #allocation3 [shape = 's32[1]{0}', space=sflag, size = 0x4, scoped, tag = 'scoped memory for tpu_custom_call.1']
    #allocation4 [shape = 's32[1]{0}', space=sflag, size = 0x4, scoped, tag = 'scoped memory for tpu_custom_call.1']
    #allocation5 [shape = 'u8[4096]{0}', space=vmem, size = 0x1000, scoped, tag = 'input window, operand 1, single buffered']
    #allocation6 [shape = 's32[1]{0}', space=sflag, size = 0x4, scoped, tag = 'scoped memory for tpu_custom_call.1']
    #allocation7 [shape = 'u8[2048]{0}', space=vmem, size = 0x800, scoped, tag = 'output window, operand 0, single buffered']
    %9 = vsyncpa [#allocation3], 0
    %10 = vsyncpa [#allocation6], 0
    %11 = vsyncpa [#allocation4], 0
    // Predicated region
    $region2: #{tpu_custom_call.1} parent=1 // pred_check
      _
    $region3: #{tpu_custom_call.1} parent=1 // pred_check_branch
      %13 = sbr.rel (0) target = $region5
    $region4: #{tpu_custom_call.1} parent=1 // pred_region
      %s15 = ssub.s32 128, 128
      %16 = vsyncadd [#allocation3], %s15
      %s18 = sshll.u32 [#allocation2], 4
      %s19 = int_to_ptr.vmem [resolvable:$true] %s18
      %21 = dma.hbm_to_vmem [thread:$0]  %s0, 128, %s19, [#allocation3]
    $region5: #{tpu_custom_call.1} parent=1 // pred_fallthru
      _
    // Predicated region
    $region6: #{tpu_custom_call.1} parent=1 // pred_check
      _
    $region7: #{tpu_custom_call.1} parent=1 // pred_check_branch
      %23 = sbr.rel (0) target = $region9
    $region8: #{tpu_custom_call.1} parent=1 // pred_region
      %s25 = ssub.s32 128, 128
      %26 = vsyncadd [#allocation6], %s25
      %s28 = sshll.u32 [#allocation5], 4
      %s29 = int_to_ptr.vmem [resolvable:$true] %s28
      %31 = dma.hbm_to_vmem [thread:$0]  %s1, 128, %s29, [#allocation6]
    $region9: #{tpu_custom_call.1} parent=1 // pred_fallthru
      _
    // Predicated region
    $region10: #{tpu_custom_call.1} parent=1 // pred_check
      _
    $region11: #{tpu_custom_call.1} parent=1 // pred_check_branch
      %33 = sbr.rel (0) target = $region13
    $region12: #{tpu_custom_call.1} parent=1 // pred_region
      %34 = dma.done [#allocation3], 128
    $region13: #{tpu_custom_call.1} parent=1 // pred_fallthru
      _
    // Predicated region
    $region14: #{tpu_custom_call.1} parent=1 // pred_check
      _
    $region15: #{tpu_custom_call.1} parent=1 // pred_check_branch
      %36 = sbr.rel (0) target = $region17
    $region16: #{tpu_custom_call.1} parent=1 // pred_region
      %37 = dma.done [#allocation6], 128
    $region17: #{tpu_custom_call.1} parent=1 // pred_fallthru
      _
    %v38 = vld [vmem:[#allocation2] sm:$0xff]
    %v39 = vld [vmem:[#allocation5] sm:$0xff]
    %v40 = vmul.f32 %v38, %v38
    %vm41 = vcmask 261120
    %v42 = vsel %vm41, %v40, 0.0
    %43 = vadd.xlane.f32.xlu0 %v42
    %v44 = vpop.xlane.xlu0 %43
    %v45 = vmax.f32 %v44, 1e-24
    %v46 = vrsqrt.pop %v45
    %v47 = vmul.f32 %v39, %v39
    %v48 = vsel %vm41, %v47, 0.0
    %49 = vadd.xlane.f32.xlu0 %v48
    %v50 = vpop.xlane.xlu0 %49
    %v51 = vmax.f32 %v50, 1e-24
    %v52 = vrsqrt.pop %v51
    %v53 = vmul.f32 %v38, %v46
    %v54 = vmul.f32 %v53, 14.285714
    %v55 = vmul.f32 %v39, %v52
    %v56 = vmul.f32 %v54, %v55
    %v57 = vsel %vm41, %v56, 0.0
    %58 = vadd.xlane.f32.xlu0 %v57
    %v59 = vpop.xlane.xlu0 %58
    %vm60 = vcmask 7168
    %61 = vst.msk [vmem:[%s3] sm:$0xff] %vm60, %v59
    %v62 = vpack.c.bf16 %v54, %v54
    %vm63 = vcmask 257024
    %64 = vst.msk [vmem:[#allocation7] sm:$0xf] %vm63, %v62
    // Predicated region
    $region18: #{tpu_custom_call.1} parent=1 // pred_check
      _
    $region19: #{tpu_custom_call.1} parent=1 // pred_check_branch
      %66 = sbr.rel (0) target = $region21
    $region20: #{tpu_custom_call.1} parent=1 // pred_region
      %s68 = ssub.s32 64, 64
      %69 = vsyncadd [#allocation4], %s68
      %s71 = sshll.u32 [#allocation7], 4
      %s72 = int_to_ptr.vmem [resolvable:$true] %s71
      %74 = dma.vmem_to_hbm [thread:$0]  %s72, 64, %s2, [#allocation4]
    $region21: #{tpu_custom_call.1} parent=1 // pred_fallthru
      _
    // Predicated region
    $region22: #{tpu_custom_call.1} parent=1 // pred_check
      _
    $region23: #{tpu_custom_call.1} parent=1 // pred_check_branch
      %76 = sbr.rel (0) target = $region25
    $region24: #{tpu_custom_call.1} parent=1 // pred_region
      _
    $region25: #{tpu_custom_call.1} parent=1 // pred_fallthru
      _
    // Predicated region
    $region26: #{tpu_custom_call.1} parent=1 // pred_check
      _
    $region27: #{tpu_custom_call.1} parent=1 // pred_check_branch
      %78 = sbr.rel (0) target = $region29
    $region28: #{tpu_custom_call.1} parent=1 // pred_region
      %79 = dma.done [#allocation4], 64
    $region29: #{tpu_custom_call.1} parent=1 // pred_fallthru
      _
    // Predicated region
    $region30: #{tpu_custom_call.1} parent=1 // pred_check
      _
    $region31: #{tpu_custom_call.1} parent=1 // pred_check_branch
      %81 = sbr.rel (0) target = $region33
    $region32: #{tpu_custom_call.1} parent=1 // pred_region
      _
    $region33: #{tpu_custom_call.1} parent=1 // pred_fallthru
      _
    %82 = vsyncpa [#allocation3], 1
    %83 = vsyncpa [#allocation6], 1
    %84 = vsyncpa [#allocation4], 1

</llo_original>
